<compile_context>
chip_gen: v6e
topology: v6e:2x2x1
jax: 0.10.0
libtpu: 0.0.40
codegen_flags: <defaults>
</compile_context>

<pallas_src>
import jax
import jax.numpy as jnp
from jax.experimental import pallas as pl
from jax.experimental.pallas import tpu as pltpu


def _round_up(x, m):
    return ((x + m - 1) // m) * m


def _kernel_mxu(adj_ref, linv_ref, w_ref, b_ref, out_ref):
    # relu(adjacency * Linv) on the VPU.
    x = jnp.maximum(adj_ref[...] * linv_ref[...], 0.0)                  # [tile, C]
    # C-reduction on the (otherwise idle) MXU: [tile, C] @ [C, 1] -> [tile, 1].
    acc = jnp.dot(x, w_ref[...], preferred_element_type=jnp.float32)
    out_ref[...] = (acc + b_ref[0, 0]).astype(out_ref.dtype)


def _kernel_vpu(adj_ref, linv_ref, w_ref, b_ref, out_ref):
    # relu(adjacency * Linv) on the VPU.
    x = jnp.maximum(adj_ref[...] * linv_ref[...], 0.0)                  # [tile, C]
    # VPU multiply with the lane-dense [1, C] weight + XLU lane reduction.
    acc = jnp.sum(x * w_ref[...], axis=-1, keepdims=True)               # [tile, 1]
    out_ref[...] = (acc + b_ref[0, 0]).astype(out_ref.dtype)


def _device_kind():
    try:
        return jax.devices()[0].device_kind.lower()
    except Exception:
        return ""


def _vmem_budgets():
    """Returns (input_vmem_budget_bytes, vmem_limit_bytes) per TPU generation."""
    try:
        phys = int(pltpu.get_tpu_info().vmem_capacity_bytes)
        if phys >= 96 * 1024 * 1024:                      # v5e / v6e: 128 MiB physical
            return 48 * 1024 * 1024, 64 * 1024 * 1024
        return 24 * 1024 * 1024, 40 * 1024 * 1024         # v7x: 64 MiB physical
    except Exception:
        return 32 * 1024 * 1024, 48 * 1024 * 1024


def _input_spec(tile, c, n_buffers):
    idx = lambda i: (i, 0)
    if n_buffers > 2:
        try:
            return pl.BlockSpec((tile, c), idx, pipeline_mode=pl.Buffered(n_buffers))
        except Exception:
            pass  # fall back to default double-buffering
    return pl.BlockSpec((tile, c), idx)


def dist2cycle_layer(adjacency, linv, weight, bias, *,
                     tile_n=None, vmem_input_budget_bytes=None):
    """Pallas implementation of Dist2CycleLayer.forward.

    adjacency, linv : [N, C] float32
    weight          : [1, C] float32   (nn.Linear weight)
    bias            : [1]    float32   (nn.Linear bias)
    returns         : [N, 1] float32
    """
    n, c = adjacency.shape
    assert linv.shape == (n, c)

    kind = _device_kind()
    is_v7x = "v7" in kind
    use_mxu = "v5" not in kind          # v5e stays on the VPU+XLU path (purely HBM-bound)
    n_buffers = 3 if is_v7x else 2
    min_steps = 8 if is_v7x else 2      # >=2 for pipeline overlap; 8 shards rows over v7x's 2 TCs

    budget, vmem_limit = _vmem_budgets()
    if vmem_input_budget_bytes is not None:
        budget = vmem_input_budget_bytes

    # Per-row VMEM footprint: 2 input streams x pipeline depth, plus ~2
    # materialized [tile, C] f32 intermediates inside the kernel body.
    per_row_bytes = (2 * n_buffers + 2) * c * 4
    max_rows_by_vmem = max(8, budget // per_row_bytes)

    n_ceil8 = _round_up(n, 8)
    tile_cap = tile_n if tile_n is not None else 8192
    tile_for_steps = _round_up(-(-n_ceil8 // min_steps), 8)
    tile = min(tile_cap, max_rows_by_vmem, n_ceil8, tile_for_steps)
    tile = max(8, (tile // 8) * 8)

    grid = (pl.cdiv(n, tile),)          # ragged last block: reads padded, writes masked

    if use_mxu:
        w_arr = weight.reshape(c, 1).astype(jnp.float32)     # [C, 1] MXU operand
    else:
        w_arr = weight.reshape(1, c).astype(jnp.float32)     # lane-dense [1, C]
    b_arr = bias.reshape(1, 1).astype(jnp.float32)           # scalar, lives in SMEM

    kernel = _kernel_mxu if use_mxu else _kernel_vpu

    out = pl.pallas_call(
        kernel,
        out_shape=jax.ShapeDtypeStruct((n, 1), jnp.float32),
        grid_spec=pltpu.PrefetchScalarGridSpec(
            num_scalar_prefetch=0,
            grid=grid,
            in_specs=[
                _input_spec(tile, c, n_buffers),              # adjacency tile
                _input_spec(tile, c, n_buffers),              # Linv tile
                pl.BlockSpec(w_arr.shape, lambda i: (0, 0)),  # weight (resident)
                pl.BlockSpec(memory_space=pltpu.SMEM),        # bias scalar
            ],
            out_specs=pl.BlockSpec((tile, 1), lambda i: (i, 0)),
        ),
        compiler_params=pltpu.CompilerParams(
            dimension_semantics=("parallel",),
            vmem_limit_bytes=vmem_limit,
        ),
    )(adjacency.astype(jnp.float32), linv.astype(jnp.float32), w_arr, b_arr)

    return out


def _reference(adjacency, linv, weight, bias):
    x_e = jnp.maximum(adjacency * linv, 0.0)
    return x_e @ weight.reshape(1, -1).T + bias.reshape(1, 1)


if __name__ == "__main__":
    key = jax.random.PRNGKey(0)
    k_adj, k_linv, k_w, k_b = jax.random.split(key, 4)

    # Small shapes; N deliberately NOT a multiple of 8 to exercise the ragged
    # (non-divisible) row grid.
    N = 36          # number of simplices (rows)
    C = 128         # channels

    adjacency = jax.random.normal(k_adj, (N, C), dtype=jnp.float32)
    linv = jax.random.normal(k_linv, (N, C), dtype=jnp.float32)

    # Deterministic parameter init mimicking reset_parameters():
    # kaiming_uniform_ with nonlinearity='relu' on weight [1, C];
    # bias from default nn.Linear reset (uniform(-1/sqrt(C), 1/sqrt(C))).
    gain = jnp.sqrt(2.0)                      # relu gain
    bound_w = gain * jnp.sqrt(3.0 / C)        # kaiming_uniform bound (fan_in = C)
    weight = jax.random.uniform(k_w, (1, C), minval=-bound_w, maxval=bound_w,
                                dtype=jnp.float32)
    bound_b = 1.0 / jnp.sqrt(C)
    bias = jax.random.uniform(k_b, (1,), minval=-bound_b, maxval=bound_b,
                              dtype=jnp.float32)

    out = dist2cycle_layer(adjacency, linv, weight, bias)
    out = jax.block_until_ready(out)

    ref = _reference(adjacency, linv, weight, bias)
    assert out.shape == (N, 1)
    assert jnp.allclose(out, ref, atol=1e-5, rtol=1e-5), "mismatch vs reference"

    print("KERNEL_OK")
</pallas_src>

<mosaic_0001>
module attributes {stable_mosaic.version = 11 : i64} {
  func.func @_kernel_mxu(%arg0: i32, %arg1: memref<24x128xf32, #tpu.memory_space<vmem>>, %arg2: memref<24x128xf32, #tpu.memory_space<vmem>>, %arg3: memref<128x1xf32, #tpu.memory_space<vmem>>, %arg4: memref<1x1xf32, #tpu.memory_space<smem>>, %arg5: memref<24x1xf32, #tpu.memory_space<vmem>>) attributes {dimension_semantics = [#tpu.dimension_semantics<parallel>], iteration_bounds = array<i64: 2>, scalar_prefetch = 0 : i64, scratch_operands = 0 : i64, tpu.core_type = #tpu.core_type<tc>, window_params = [{transform_indices = @transform_0, window_bounds = array<i64: 24, 128>}, {transform_indices = @transform_1, window_bounds = array<i64: 24, 128>}, {pipeline_mode = #tpu.pipeline_mode<synchronous>, transform_indices = @transform_2, window_bounds = array<i64: 128, 1>}, {transform_indices = @transform_3, window_bounds = array<i64: 1, 1>}, {transform_indices = @transform_4, window_bounds = array<i64: 24, 1>}]} {
    %c0 = arith.constant 0 : index
    %c0_0 = arith.constant 0 : index
    %0 = vector.load %arg1[%c0, %c0_0] : memref<24x128xf32, #tpu.memory_space<vmem>>, vector<24x128xf32>
    %c0_1 = arith.constant 0 : index
    %c0_2 = arith.constant 0 : index
    %1 = vector.load %arg2[%c0_1, %c0_2] : memref<24x128xf32, #tpu.memory_space<vmem>>, vector<24x128xf32>
    %2 = arith.mulf %0, %1 : vector<24x128xf32>
    %cst = arith.constant 0.000000e+00 : f32
    %3 = vector.broadcast %cst : f32 to vector<24x128xf32>
    %4 = arith.maximumf %2, %3 : vector<24x128xf32>
    %c0_3 = arith.constant 0 : index
    %c0_4 = arith.constant 0 : index
    %5 = vector.load %arg3[%c0_3, %c0_4] : memref<128x1xf32, #tpu.memory_space<vmem>>, vector<128x1xf32>
    %cst_5 = arith.constant dense<0.000000e+00> : vector<24x1xf32>
    %6 = tpu.matmul %4, %5, %cst_5 {dimension_numbers = #tpu.dot_dimension_numbers<[1], [0], [0], [1], [0, 0, 1, 1], [], []>} : vector<24x128xf32>, vector<128x1xf32>, vector<24x1xf32> -> vector<24x1xf32>
    %c0_6 = arith.constant 0 : index
    %c0_7 = arith.constant 0 : index
    %7 = memref.load %arg4[%c0_6, %c0_7] : memref<1x1xf32, #tpu.memory_space<smem>>
    %8 = vector.broadcast %7 : f32 to vector<24x1xf32>
    %9 = arith.addf %6, %8 : vector<24x1xf32>
    %c0_8 = arith.constant 0 : index
    %c0_9 = arith.constant 0 : index
    %10 = vector.load %arg5[%c0_8, %c0_9] : memref<24x1xf32, #tpu.memory_space<vmem>>, vector<24x1xf32>
    tpu.vector_store %arg5[%c0_8, %c0_9], %9 {strides = array<i32>} : memref<24x1xf32, #tpu.memory_space<vmem>>, vector<24x1xf32>,
    return
  }
  func.func @transform_0(%arg0: i32) -> (i32, i32) {
    %c0_i32 = arith.constant 0 : i32
    %c0_i32_0 = arith.constant 0 : i32
    return %arg0, %c0_i32 : i32, i32
  }
  func.func @transform_1(%arg0: i32) -> (i32, i32) {
    %c0_i32 = arith.constant 0 : i32
    %c0_i32_0 = arith.constant 0 : i32
    return %arg0, %c0_i32 : i32, i32
  }
  func.func @transform_2(%arg0: i32) -> (i32, i32) {
    %c0_i32 = arith.constant 0 : i32
    %c0_i32_0 = arith.constant 0 : i32
    %c0_i32_1 = arith.constant 0 : i32
    return %c0_i32, %c0_i32_0 : i32, i32
  }
  func.func @transform_3(%arg0: i32) -> (i32, i32) {
    %c0_i32 = arith.constant 0 : i32
    %c0_i32_0 = arith.constant 0 : i32
    %c0_i32_1 = arith.constant 0 : i32
    return %c0_i32, %c0_i32_0 : i32, i32
  }
  func.func @transform_4(%arg0: i32) -> (i32, i32) {
    %c0_i32 = arith.constant 0 : i32
    %c0_i32_0 = arith.constant 0 : i32
    return %arg0, %c0_i32 : i32, i32
  }
}

</mosaic_0001>

<llo_original>
// kernel: tpu_custom_call.1
$region0: #{tpu_custom_call.1}
  #allocation0 [shape = 'u32[]', space=smem, size = 0x4, offset = 0x4, fixed_abs, tag = 'smem constant byte address 0x4 - core index']
  #allocation1 [shape = 'u32[144,128]{1,0:T(1,128)}', space=vmem, size = 0x12000, scoped, tag = 'internal scratch']
  #allocation2 [shape = 'f32[1,1]{1,0:T(1,128)S(6)}', space=smem, size = 0x200, scoped, tag = 'scoped memory for tpu_custom_call.1']
  %s0 = inlined_call_operand.vmem [shape: f32[36,128], index: 0, kind: input, shape index: {}]
  %s1 = inlined_call_operand.vmem [shape: f32[36,128], index: 1, kind: input, shape index: {}]
  %s2 = inlined_call_operand.vmem [shape: f32[128,1], index: 2, kind: input, shape index: {}]
  %s3 = inlined_call_operand.<no memory space> [shape: f32[1,1], index: 3, kind: input, shape index: {}]
  %s4 = inlined_call_operand.vmem [shape: f32[36,1], index: 4, kind: output, shape index: {}]
  %s5 = sld [smem:[#allocation0]]
  $region97: #{tpu_custom_call.1} parent=0
    _
  %s7 = ssub.s32 1, %s5
  %s8 = scalar_select 0, %s7, %s5
  %9 = sst [smem:[#allocation2]] %s3
  $region1: #{tpu_custom_call.1} parent=0
    #allocation3 [shape = 'u8[24576]{0}', space=vmem, size = 0x6000, scoped, tag = 'output window, operand 0']
    loop: start=0, step=1, limit=4
    $region2: #{tpu_custom_call.1} parent=1 // loop_pre_header
      _
    $region3: #{tpu_custom_call.1} parent=1 // loop_header
      %s11 = sphi 0, %s15
      %p12 = scmp.ge.s32.totalorder %s11, 4
      %s21 = sphi 0, %s23
      %s24 = sphi 0, %s21
      %s25 = sphi 0, %s24
      %s41 = sphi 0, %s25
      %s47 = sphi 0, %s49
      %s50 = sphi 0, %s47
      %s51 = sphi 0, %s50
      %s67 = sphi 0, %s51
      %s71 = sphi 0, %s71
      %s73 = sphi 0, %s71
      %s74 = sphi 0, %s73
      %s88 = sphi 0, %s74
      %s92 = sphi 0, %s92
      %s94 = sphi 0, %s92
      %s95 = sphi 0, %s94
      %s109 = sphi 0, %s95
      %s115 = sphi 0, %s117
      %s118 = sphi 0, %s115
      %s119 = sphi 0, %s118
      %s135 = sphi 0, %s119
    $region4: #{tpu_custom_call.1} parent=1 // loop_header_branch
      %14 = sbr.rel (%p12) target = $region8
    $region5: #{tpu_custom_call.1} parent=1 // loop_body
      %s16 = ssub.s32 %s11, 1
      %s17 = ssub.s32 %s11, 2
      %s18 = sadd.s32 %s11, 1
      %s19 = ssub.s32 %s11, %s18
      %p20 = scmp.eq.s32.totalorder %s19, 0
      %s22 = sadd.s32 %s21, 1
      %s23 = scalar_select %p20, %s21, %s22
      %p26 = pneg %p20
      %p27 = scmp.eq.s32.totalorder %s11, 1
      %p28 = por %p26, %p27
      %p29 = scmp.ne.s32.totalorder %s21, %s24
      %p30 = scmp.eq.s32.totalorder %s11, 0
      %p31 = por %p29, %p30
      %p32 = scmp.ne.s32.totalorder %s21, %s24
      %p33 = scmp.eq.s32.totalorder %s16, 1
      %p34 = por %p32, %p33
      %p35 = scmp.ne.s32.totalorder %s24, %s25
      %p36 = scmp.eq.s32.totalorder %s16, 0
      %p37 = por %p35, %p36
      %p38 = scmp.ne.s32.totalorder %s24, %s25
      %p39 = scmp.eq.s32.totalorder %s17, 1
      %p40 = por %p38, %p39
      %p42 = scmp.ne.s32.totalorder %s25, %s41
      %p43 = scmp.eq.s32.totalorder %s17, 0
      %p44 = por %p42, %p43
      %s45 = ssub.s32 %s11, %s18
      %p46 = scmp.eq.s32.totalorder %s45, 0
      %s48 = sadd.s32 %s47, 1
      %s49 = scalar_select %p46, %s47, %s48
      %p52 = pneg %p46
      %p53 = scmp.eq.s32.totalorder %s11, 1
      %p54 = por %p52, %p53
      %p55 = scmp.ne.s32.totalorder %s47, %s50
      %p56 = scmp.eq.s32.totalorder %s11, 0
      %p57 = por %p55, %p56
      %p58 = scmp.ne.s32.totalorder %s47, %s50
      %p59 = scmp.eq.s32.totalorder %s16, 1
      %p60 = por %p58, %p59
      %p61 = scmp.ne.s32.totalorder %s50, %s51
      %p62 = scmp.eq.s32.totalorder %s16, 0
      %p63 = por %p61, %p62
      %p64 = scmp.ne.s32.totalorder %s50, %s51
      %p65 = scmp.eq.s32.totalorder %s17, 1
      %p66 = por %p64, %p65
      %p68 = scmp.ne.s32.totalorder %s51, %s67
      %p69 = scmp.eq.s32.totalorder %s17, 0
      %p70 = por %p68, %p69
      %s72 = sadd.s32 %s71, 1
      %p75 = scmp.eq.s32.totalorder %s11, 1
      %p76 = scmp.ne.s32.totalorder %s71, %s73
      %p77 = scmp.eq.s32.totalorder %s11, 0
      %p78 = por %p76, %p77
      %p79 = scmp.ne.s32.totalorder %s71, %s73
      %p80 = scmp.eq.s32.totalorder %s16, 1
      %p81 = por %p79, %p80
      %p82 = scmp.ne.s32.totalorder %s73, %s74
      %p83 = scmp.eq.s32.totalorder %s16, 0
      %p84 = por %p82, %p83
      %p85 = scmp.ne.s32.totalorder %s73, %s74
      %p86 = scmp.eq.s32.totalorder %s17, 1
      %p87 = por %p85, %p86
      %p89 = scmp.ne.s32.totalorder %s74, %s88
      %p90 = scmp.eq.s32.totalorder %s17, 0
      %p91 = por %p89, %p90
      %s93 = sadd.s32 %s92, 1
      %p96 = scmp.eq.s32.totalorder %s11, 1
      %p97 = scmp.ne.s32.totalorder %s92, %s94
      %p98 = scmp.eq.s32.totalorder %s11, 0
      %p99 = por %p97, %p98
      %p100 = scmp.ne.s32.totalorder %s92, %s94
      %p101 = scmp.eq.s32.totalorder %s16, 1
      %p102 = por %p100, %p101
      %p103 = scmp.ne.s32.totalorder %s94, %s95
      %p104 = scmp.eq.s32.totalorder %s16, 0
      %p105 = por %p103, %p104
      %p106 = scmp.ne.s32.totalorder %s94, %s95
      %p107 = scmp.eq.s32.totalorder %s17, 1
      %p108 = por %p106, %p107
      %p110 = scmp.ne.s32.totalorder %s95, %s109
      %p111 = scmp.eq.s32.totalorder %s17, 0
      %p112 = por %p110, %p111
      %s113 = ssub.s32 %s11, %s18
      %p114 = scmp.eq.s32.totalorder %s113, 0
      %s116 = sadd.s32 %s115, 1
      %s117 = scalar_select %p114, %s115, %s116
      %p120 = pneg %p114
      %p121 = scmp.eq.s32.totalorder %s11, 1
      %p122 = por %p120, %p121
      %p123 = scmp.ne.s32.totalorder %s115, %s118
      %p124 = scmp.eq.s32.totalorder %s11, 0
      %p125 = por %p123, %p124
      %p126 = scmp.ne.s32.totalorder %s115, %s118
      %p127 = scmp.eq.s32.totalorder %s16, 1
      %p128 = por %p126, %p127
      %p129 = scmp.ne.s32.totalorder %s118, %s119
      %p130 = scmp.eq.s32.totalorder %s16, 0
      %p131 = por %p129, %p130
      %p132 = scmp.ne.s32.totalorder %s118, %s119
      %p133 = scmp.eq.s32.totalorder %s17, 1
      %p134 = por %p132, %p133
      %p136 = scmp.ne.s32.totalorder %s119, %s135
      %p137 = scmp.eq.s32.totalorder %s17, 0
      %p138 = por %p136, %p137
      %p139 = scmp.le.s32.totalorder 1, %s11
      %p140 = scmp.lt.s32.totalorder %s11, 3
      %p141 = pnand %p139, %p140
      %p142 = pneg %p141
      // Predicated region
      $region9: #{tpu_custom_call.1} parent=5 // pred_check
        _
      $region10: #{tpu_custom_call.1} parent=5 // pred_check_branch
        %144 = sbr.rel (%p141) target = $region12
      $region11: #{tpu_custom_call.1} parent=5 // pred_region
        %s145 = ssub.s32 %s11, 1
        // Predicated region
        $region13: #{tpu_custom_call.1} parent=11 // pred_check
          %p146 = pneg %p84
        $region14: #{tpu_custom_call.1} parent=11 // pred_check_branch
          %148 = sbr.rel (%p146) target = $region16
        $region15: #{tpu_custom_call.1} parent=11 // pred_region
          _
        $region16: #{tpu_custom_call.1} parent=11 // pred_fallthru
          _
        // Predicated region
        $region17: #{tpu_custom_call.1} parent=11 // pred_check
          %p149 = pneg %p105
        $region18: #{tpu_custom_call.1} parent=11 // pred_check_branch
          %151 = sbr.rel (%p149) target = $region20
        $region19: #{tpu_custom_call.1} parent=11 // pred_region
          _
        $region20: #{tpu_custom_call.1} parent=11 // pred_fallthru
          _
      $region12: #{tpu_custom_call.1} parent=5 // pred_fallthru
        _
      %p152 = scmp.lt.s32.totalorder %s11, 2
      // Predicated region
      $region21: #{tpu_custom_call.1} parent=5 // pred_check
        %p153 = pneg %p152
      $region22: #{tpu_custom_call.1} parent=5 // pred_check_branch
        %155 = sbr.rel (%p153) target = $region24
      $region23: #{tpu_custom_call.1} parent=5 // pred_region
        // Predicated region
        $region25: #{tpu_custom_call.1} parent=23 // pred_check
          %p156 = pneg %p31
        $region26: #{tpu_custom_call.1} parent=23 // pred_check_branch
          %158 = sbr.rel (%p156) target = $region28
        $region27: #{tpu_custom_call.1} parent=23 // pred_region
          %s159 = smul.u32 3, %s11
          %s160 = ssub.s32 5, %s159
          %p161 = scmp.lt.s32.totalorder %s160, 3
          %s162 = scalar_select %p161, %s160, 3
          %s163 = smul.u32 128, %s162
          %p164 = scmp.lt.s32.totalorder %s159, 4
          %s165 = scalar_select %p164, %s159, 4
          %s166 = smul.addr %s165, 8
          %s167 = scalar_lea.vmem %s0, %s166
          %s168 = smul.u32 3, %s11
          %s169 = ssub.s32 5, %s168
          %p170 = scmp.lt.s32.totalorder %s169, 3
          %s171 = scalar_select %p170, %s169, 3
          %s172 = smul.u32 128, %s171
        $region28: #{tpu_custom_call.1} parent=23 // pred_fallthru
          _
        // Predicated region
        $region29: #{tpu_custom_call.1} parent=23 // pred_check
          %p173 = pneg %p57
        $region30: #{tpu_custom_call.1} parent=23 // pred_check_branch
          %175 = sbr.rel (%p173) target = $region32
        $region31: #{tpu_custom_call.1} parent=23 // pred_region
          %s176 = smul.u32 3, %s11
          %s177 = ssub.s32 5, %s176
          %p178 = scmp.lt.s32.totalorder %s177, 3
          %s179 = scalar_select %p178, %s177, 3
          %s180 = smul.u32 128, %s179
          %p181 = scmp.lt.s32.totalorder %s176, 4
          %s182 = scalar_select %p181, %s176, 4
          %s183 = smul.addr %s182, 8
          %s184 = scalar_lea.vmem %s1, %s183
          %s185 = smul.u32 3, %s11
          %s186 = ssub.s32 5, %s185
          %p187 = scmp.lt.s32.totalorder %s186, 3
          %s188 = scalar_select %p187, %s186, 3
          %s189 = smul.u32 128, %s188
        $region32: #{tpu_custom_call.1} parent=23 // pred_fallthru
          _
      $region24: #{tpu_custom_call.1} parent=5 // pred_fallthru
        _
      %p190 = scmp.le.s32.totalorder 1, %s11
      %p191 = scmp.lt.s32.totalorder %s11, 3
      %p192 = pnand %p190, %p191
      %p193 = pneg %p192
      // Predicated region
      $region33: #{tpu_custom_call.1} parent=5 // pred_check
        _
      $region34: #{tpu_custom_call.1} parent=5 // pred_check_branch
        %195 = sbr.rel (%p192) target = $region36
      $region35: #{tpu_custom_call.1} parent=5 // pred_region
        %s196 = ssub.s32 %s11, 1
        %s197 = smul.u32 3, %s16
        %s198 = ssub.s32 5, %s197
        %p199 = scmp.lt.s32.totalorder %s198, 3
        %s200 = scalar_select %p199, %s198, 3
        %s201 = smul.u32 128, %s200
        %p202 = scmp.lt.s32.totalorder %s197, 4
        %s203 = scalar_select %p202, %s197, 4
        %s204 = smul.addr %s203, 8
        %s205 = scalar_lea.vmem %s0, %s204
        %p206 = pneg %p37
        %p207 = pneg %p34
        %s208 = smul.u32 3, %s16
        %s209 = ssub.s32 5, %s208
        %p210 = scmp.lt.s32.totalorder %s209, 3
        %s211 = scalar_select %p210, %s209, 3
        %s212 = smul.u32 128, %s211
        %p213 = scmp.lt.s32.totalorder %s208, 4
        %s214 = scalar_select %p213, %s208, 4
        %s215 = smul.addr %s214, 8
        %s216 = scalar_lea.vmem %s1, %s215
        %p217 = pneg %p63
        %p218 = pneg %p60
        %p219 = pneg %p84
        %p220 = pneg %p81
        %p221 = pneg %p105
        %p222 = pneg %p102
        %p223 = pneg %p131
        %p224 = pneg %p128
        %s225 = sand.u32 %s118, 1
        %s226 = sand.u32 %s118, 1
        %s227 = smul.addr %s226, 24
        %s228 = scalar_lea.vmem [#allocation3], %s227
        %s229 = smul.u32 3, %s16
        %s230 = ssub.s32 5, %s229
        %p231 = scmp.lt.s32.totalorder %s230, 3
        %s232 = scalar_select %p231, %s230, 3
        %s233 = smul.u32 128, %s232
        %p234 = scmp.lt.s32.totalorder %s229, 4
        %s235 = scalar_select %p234, %s229, 4
        %s236 = smul.addr %s235, 8
        %s237 = scalar_lea.vmem %s0, %s236
        %s238 = smul.u32 3, %s16
        %s239 = ssub.s32 5, %s238
        %p240 = scmp.lt.s32.totalorder %s239, 3
        %s241 = scalar_select %p240, %s239, 3
        %s242 = smul.u32 128, %s241
        %s243 = smul.u32 3, %s16
        %s244 = ssub.s32 5, %s243
        %p245 = scmp.lt.s32.totalorder %s244, 3
        %s246 = scalar_select %p245, %s244, 3
        %s247 = smul.u32 128, %s246
        %p248 = scmp.lt.s32.totalorder %s243, 4
        %s249 = scalar_select %p248, %s243, 4
        %s250 = smul.addr %s249, 8
        %s251 = scalar_lea.vmem %s1, %s250
        %s252 = smul.u32 3, %s16
        %s253 = ssub.s32 5, %s252
        %p254 = scmp.lt.s32.totalorder %s253, 3
        %s255 = scalar_select %p254, %s253, 3
        %s256 = smul.u32 128, %s255
        %s257 = smul.u32 3, %s16
        %s258 = ssub.s32 5, %s257
        %p259 = scmp.lt.s32.totalorder %s258, 3
        %s260 = scalar_select %p259, %s258, 3
        %s261 = smul.u32 128, %s260
        %v262 = vld [vmem:[%s237] sm:$0xff]
        %v263 = vld [vmem:[%s237 + $0x8] sm:$0xff]
        %v264 = vld [vmem:[%s237 + $0x10] sm:$0xff]
        %v265 = vld [vmem:[%s251] sm:$0xff]
        %v266 = vld [vmem:[%s251 + $0x8] sm:$0xff]
        %v267 = vld [vmem:[%s251 + $0x10] sm:$0xff]
        %v268 = vmul.f32 %v262, %v265
        %v269 = vmul.f32 %v263, %v266
        %v270 = vmul.f32 %v264, %v267
        %v271 = vmax.f32 %v268, 0.0
        %v272 = vmax.f32 %v269, 0.0
        %v273 = vmax.f32 %v270, 0.0
        %v274 = vld [vmem:[%s2] sm:$0xff]
        %v275 = vld [vmem:[%s2 + $0x8] sm:$0xff]
        %v276 = vld [vmem:[%s2 + $0x10] sm:$0xff]
        %v277 = vld [vmem:[%s2 + $0x18] sm:$0xff]
        %v278 = vld [vmem:[%s2 + $0x20] sm:$0xff]
        %v279 = vld [vmem:[%s2 + $0x28] sm:$0xff]
        %v280 = vld [vmem:[%s2 + $0x30] sm:$0xff]
        %v281 = vld [vmem:[%s2 + $0x38] sm:$0xff]
        %v282 = vld [vmem:[%s2 + $0x40] sm:$0xff]
        %v283 = vld [vmem:[%s2 + $0x48] sm:$0xff]
        %v284 = vld [vmem:[%s2 + $0x50] sm:$0xff]
        %v285 = vld [vmem:[%s2 + $0x58] sm:$0xff]
        %v286 = vld [vmem:[%s2 + $0x60] sm:$0xff]
        %v287 = vld [vmem:[%s2 + $0x68] sm:$0xff]
        %v288 = vld [vmem:[%s2 + $0x70] sm:$0xff]
        %v289 = vld [vmem:[%s2 + $0x78] sm:$0xff]
        %s290 = sld [smem:[#allocation2]]
        %v291 = vstv %s290
        %292 = vmatprep.subr.mxu0 0.0
        %293 = vmatpush1.msra.mxu0 %v289
        %294 = vmatprep.subr.mxu0 0.0
        %295 = vmatpush1.msra.mxu0 %v288
        %296 = vmatprep.subr.mxu0 0.0
        %297 = vmatpush1.msra.mxu0 %v287
        %298 = vmatprep.subr.mxu0 0.0
        %299 = vmatpush1.msra.mxu0 %v286
        %300 = vmatprep.subr.mxu0 0.0
        %301 = vmatpush1.msra.mxu0 %v285
        %302 = vmatprep.subr.mxu0 0.0
        %303 = vmatpush1.msra.mxu0 %v284
        %304 = vmatprep.subr.mxu0 0.0
        %305 = vmatpush1.msra.mxu0 %v283
        %306 = vmatprep.subr.mxu0 0.0
        %307 = vmatpush1.msra.mxu0 %v282
        %308 = vmatprep.subr.mxu0 0.0
        %309 = vmatpush1.msra.mxu0 %v281
        %310 = vmatprep.subr.mxu0 0.0
        %311 = vmatpush1.msra.mxu0 %v280
        %312 = vmatprep.subr.mxu0 0.0
        %313 = vmatpush1.msra.mxu0 %v279
        %314 = vmatprep.subr.mxu0 0.0
        %315 = vmatpush1.msra.mxu0 %v278
        %316 = vmatprep.subr.mxu0 0.0
        %317 = vmatpush1.msra.mxu0 %v277
        %318 = vmatprep.subr.mxu0 0.0
        %319 = vmatpush1.msra.mxu0 %v276
        %320 = vmatprep.subr.mxu0 0.0
        %321 = vmatpush1.msra.mxu0 %v275
        %322 = vmatprep.subr.mxu0 0.0
        %323 = vmatpush1.msra.mxu0 %v274
        %324 = vmatprep.subr.mxu0 0.0
        %325 = vmatpush2.msra.mxu0 0.0
        %326 = vmatprep.subr.mxu0 0.0
        %327 = vmatpush2.msra.mxu0 0.0
        %328 = vmatprep.subr.mxu0 0.0
        %329 = vmatpush2.msra.mxu0 0.0
        %330 = vmatprep.subr.mxu0 0.0
        %331 = vmatpush2.msra.mxu0 0.0
        %332 = vmatprep.subr.mxu0 0.0
        %333 = vmatpush2.msra.mxu0 0.0
        %334 = vmatprep.subr.mxu0 0.0
        %335 = vmatpush2.msra.mxu0 0.0
        %336 = vmatprep.subr.mxu0 0.0
        %337 = vmatpush2.msra.mxu0 0.0
        %338 = vmatprep.subr.mxu0 0.0
        %339 = vmatpush2.msra.mxu0 0.0
        %340 = vmatprep.subr.mxu0 0.0
        %341 = vmatpush2.msra.mxu0 0.0
        %342 = vmatprep.subr.mxu0 0.0
        %343 = vmatpush2.msra.mxu0 0.0
        %344 = vmatprep.subr.mxu0 0.0
        %345 = vmatpush2.msra.mxu0 0.0
        %346 = vmatprep.subr.mxu0 0.0
        %347 = vmatpush2.msra.mxu0 0.0
        %348 = vmatprep.subr.mxu0 0.0
        %349 = vmatpush2.msra.mxu0 0.0
        %350 = vmatprep.subr.mxu0 0.0
        %351 = vmatpush2.msra.mxu0 0.0
        %352 = vmatprep.subr.mxu0 0.0
        %353 = vmatpush2.msra.mxu0 0.0
        %354 = vmatprep.subr.mxu0 0.0
        %355 = vmatpush2.msra.mxu0 0.0
        %356 = vmatprep.mubr.f32.mxu0 0.0
        %357 = vmatmul.mubr.f32.gmra.mxu0 %v271
        %v358 = vpop.f32.mrf.mxu0
        %v359 = vadd.f32 %v291, %v358
        %v360 = vpop.f32.mrf.mxu0
        %361 = vmatprep.mubr.f32.mxu0 0.0
        %362 = vmatmul.mubr.f32.gmra.mxu0 %v272
        %v363 = vpop.f32.mrf.mxu0
        %v364 = vadd.f32 %v291, %v363
        %v365 = vpop.f32.mrf.mxu0
        %366 = vmatprep.mubr.f32.mxu0 0.0
        %367 = vmatmul.mubr.f32.gmra.mxu0 %v273
        %v368 = vpop.f32.mrf.mxu0
        %v369 = vadd.f32 %v291, %v368
        %v370 = vpop.f32.mrf.mxu0
        %371 = vdwg.mxu0
        %vm372 = vcmask 7168
        %373 = vst.msk [vmem:[%s228] sm:$0xff] %vm372, %v359
        %374 = vst.msk [vmem:[%s228 + $0x8] sm:$0xff] %vm372, %v364
        %375 = vst.msk [vmem:[%s228 + $0x10] sm:$0xff] %vm372, %v369
        %s376 = sand.u32 %s118, 1
        %s377 = sand.u32 %s118, 1
        %s378 = smul.addr %s377, 24
        %s379 = scalar_lea.vmem [#allocation3], %s378
        // Predicated region
        $region37: #{tpu_custom_call.1} parent=35 // pred_check
          %p380 = pneg %p128
        $region38: #{tpu_custom_call.1} parent=35 // pred_check_branch
          %382 = sbr.rel (%p380) target = $region40
        $region39: #{tpu_custom_call.1} parent=35 // pred_region
          %s383 = smul.u32 3, %s16
          %s384 = ssub.s32 5, %s383
          %p385 = scmp.lt.s32.totalorder %s384, 3
          %s386 = scalar_select %p385, %s384, 3
          %s387 = smul.u32 128, %s386
          %p388 = scmp.ne.s32.totalorder 0, %s387
          %s389 = smul.addr %s383, 8
          %s390 = scalar_lea.vmem %s4, %s389
          // Predicated region
          $region41: #{tpu_custom_call.1} parent=39 // pred_check
            %p391 = pneg %p388
          $region42: #{tpu_custom_call.1} parent=39 // pred_check_branch
            %393 = sbr.rel (%p391) target = $region44
          $region43: #{tpu_custom_call.1} parent=39 // pred_region
            // Predicated region
            $region45: #{tpu_custom_call.1} parent=43 // pred_check
              _
            $region46: #{tpu_custom_call.1} parent=43 // pred_check_branch
              %395 = sbr.rel (0) target = $region48
            $region47: #{tpu_custom_call.1} parent=43 // pred_region
              // Predicated region
              $region67: #{tpu_custom_call.1} parent=47 // pred_check
                _
              $region68: #{tpu_custom_call.1} parent=47 // pred_check_branch
                %450 = sbr.rel (0) target = $region70
              $region69: #{tpu_custom_call.1} parent=47 // pred_region
                %s451 = sdiv.u32.pop %s386, 3
                %s452 = srem.u32.pop %s386, 3
                // While loop
                $region71: #{tpu_custom_call.1} parent=69 // loop_pre_header
                  _
                $region72: #{tpu_custom_call.1} parent=69 // loop_header
                  %s454 = sphi 0, %s456
                  %p455 = scmp.ge.s32.totalorder %s454, %s451
                  %s459 = sphi 0, %s470
                  %s460 = sphi %s379, %s473
                  %s461 = sphi %s390, %s474
                $region73: #{tpu_custom_call.1} parent=69 // loop_header_branch
                  %458 = sbr.rel (%p455) target = $region77
                $region74: #{tpu_custom_call.1} parent=69 // loop_body
                  %v462 = vld [vmem:[%s460] sm:$0xff]
                  %463 = vst [vmem:[%s461] sm:$0xff] %v462
                  %v464 = vld [vmem:[%s460 + $0x8] sm:$0xff]
                  %465 = vst [vmem:[%s461 + $0x8] sm:$0xff] %v464
                  %v466 = vld [vmem:[%s460 + $0x10] sm:$0xff]
                  %467 = vst [vmem:[%s461 + $0x10] sm:$0xff] %v466
                  %s468 = sadd.s32 1, %s459
                  %p469 = scmp.ge.s32.totalorder %s468, %s451
                  %s470 = scalar_select %p469, 0, %s468
                  %s471 = smul.u32 %s470, 24
                  %s472 = smul.u32 %s470, 24
                  %s473 = scalar_lea.vmem %s379, %s471 [#allocation3]
                  %s474 = scalar_lea.vmem %s390, %s472
                $region75: #{tpu_custom_call.1} parent=69 // loop_footer
                  %s456 = sadd.s32 %s454, 1
                $region76: #{tpu_custom_call.1} parent=69 // loop_footer_branch
                  %453 = sbr.rel target = $region72
                $region77: #{tpu_custom_call.1} parent=69 // loop_exit
                  _
                %s475 = sdiv.u32.pop %s386, 3
                %s476 = srem.u32.pop %s386, 3
                %s477 = smul.u32 %s475, 3
                %s478 = smul.u32 8, %s477
                %s479 = scalar_lea.vmem %s379, %s478 [#allocation3]
                %s480 = smul.u32 8, %s477
                %s481 = scalar_lea.vmem %s390, %s480
                // While loop
                $region78: #{tpu_custom_call.1} parent=69 // loop_pre_header
                  _
                $region79: #{tpu_custom_call.1} parent=69 // loop_header
                  %s483 = sphi 0, %s485
                  %p484 = scmp.ge.s32.totalorder %s483, %s476
                  %s488 = sphi 0, %s495
                  %s489 = sphi %s479, %s498
                  %s490 = sphi %s481, %s499
                $region80: #{tpu_custom_call.1} parent=69 // loop_header_branch
                  %487 = sbr.rel (%p484) target = $region84
                $region81: #{tpu_custom_call.1} parent=69 // loop_body
                  %v491 = vld [vmem:[%s489] sm:$0xff]
                  %492 = vst [vmem:[%s490] sm:$0xff] %v491
                  %s493 = sadd.s32 1, %s488
                  %p494 = scmp.ge.s32.totalorder %s493, %s476
                  %s495 = scalar_select %p494, 0, %s493
                  %s496 = smul.u32 %s495, 8
                  %s497 = smul.u32 %s495, 8
                  %s498 = scalar_lea.vmem %s479, %s496 [#allocation3]
                  %s499 = scalar_lea.vmem %s481, %s497
                $region82: #{tpu_custom_call.1} parent=69 // loop_footer
                  %s485 = sadd.s32 %s483, 1
                $region83: #{tpu_custom_call.1} parent=69 // loop_footer_branch
                  %482 = sbr.rel target = $region79
                $region84: #{tpu_custom_call.1} parent=69 // loop_exit
                  _
              $region70: #{tpu_custom_call.1} parent=47 // pred_fallthru
                _
              // Predicated region
              $region85: #{tpu_custom_call.1} parent=47 // pred_check
                _
              $region86: #{tpu_custom_call.1} parent=47 // pred_check_branch
                %501 = sbr.rel target = $region88
              $region87: #{tpu_custom_call.1} parent=47 // pred_region
                _
              $region88: #{tpu_custom_call.1} parent=47 // pred_fallthru
                _
            $region48: #{tpu_custom_call.1} parent=43 // pred_fallthru
              _
            // Predicated region
            $region49: #{tpu_custom_call.1} parent=43 // pred_check
              _
            $region50: #{tpu_custom_call.1} parent=43 // pred_check_branch
              %397 = sbr.rel target = $region52
            $region51: #{tpu_custom_call.1} parent=43 // pred_region
              %s399 = ssub.s32 256, 1
              %s400 = sdiv.u32.pop %s386, 3
              %s401 = srem.u32.pop %s386, 3
              // While loop
              $region53: #{tpu_custom_call.1} parent=51 // loop_pre_header
                _
              $region54: #{tpu_custom_call.1} parent=51 // loop_header
                %s403 = sphi 0, %s405
                %p404 = scmp.ge.s32.totalorder %s403, %s400
                %s408 = sphi 0, %s419
                %s409 = sphi %s379, %s422
                %s410 = sphi %s390, %s423
              $region55: #{tpu_custom_call.1} parent=51 // loop_header_branch
                %407 = sbr.rel (%p404) target = $region59
              $region56: #{tpu_custom_call.1} parent=51 // loop_body
                %v411 = vld [vmem:[%s409] sm:%s399]
                %412 = vst [vmem:[%s410] sm:%s399] %v411
                %v413 = vld [vmem:[%s409 + $0x8] sm:%s399]
                %414 = vst [vmem:[%s410 + $0x8] sm:%s399] %v413
                %v415 = vld [vmem:[%s409 + $0x10] sm:%s399]
                %416 = vst [vmem:[%s410 + $0x10] sm:%s399] %v415
                %s417 = sadd.s32 1, %s408
                %p418 = scmp.ge.s32.totalorder %s417, %s400
                %s419 = scalar_select %p418, 0, %s417
                %s420 = smul.u32 %s419, 24
                %s421 = smul.u32 %s419, 24
                %s422 = scalar_lea.vmem %s379, %s420 [#allocation3]
                %s423 = scalar_lea.vmem %s390, %s421
              $region57: #{tpu_custom_call.1} parent=51 // loop_footer
                %s405 = sadd.s32 %s403, 1
              $region58: #{tpu_custom_call.1} parent=51 // loop_footer_branch
                %402 = sbr.rel target = $region54
              $region59: #{tpu_custom_call.1} parent=51 // loop_exit
                _
              %s424 = sdiv.u32.pop %s386, 3
              %s425 = srem.u32.pop %s386, 3
              %s426 = smul.u32 %s424, 3
              %s427 = smul.u32 8, %s426
              %s428 = scalar_lea.vmem %s379, %s427 [#allocation3]
              %s429 = smul.u32 8, %s426
              %s430 = scalar_lea.vmem %s390, %s429
              // While loop
              $region60: #{tpu_custom_call.1} parent=51 // loop_pre_header
                _
              $region61: #{tpu_custom_call.1} parent=51 // loop_header
                %s432 = sphi 0, %s434
                %p433 = scmp.ge.s32.totalorder %s432, %s425
                %s437 = sphi 0, %s444
                %s438 = sphi %s428, %s447
                %s439 = sphi %s430, %s448
              $region62: #{tpu_custom_call.1} parent=51 // loop_header_branch
                %436 = sbr.rel (%p433) target = $region66
              $region63: #{tpu_custom_call.1} parent=51 // loop_body
                %v440 = vld [vmem:[%s438] sm:%s399]
                %441 = vst [vmem:[%s439] sm:%s399] %v440
                %s442 = sadd.s32 1, %s437
                %p443 = scmp.ge.s32.totalorder %s442, %s425
                %s444 = scalar_select %p443, 0, %s442
                %s445 = smul.u32 %s444, 8
                %s446 = smul.u32 %s444, 8
                %s447 = scalar_lea.vmem %s428, %s445 [#allocation3]
                %s448 = scalar_lea.vmem %s430, %s446
              $region64: #{tpu_custom_call.1} parent=51 // loop_footer
                %s434 = sadd.s32 %s432, 1
              $region65: #{tpu_custom_call.1} parent=51 // loop_footer_branch
                %431 = sbr.rel target = $region61
              $region66: #{tpu_custom_call.1} parent=51 // loop_exit
                _
            $region52: #{tpu_custom_call.1} parent=43 // pred_fallthru
              _
          $region44: #{tpu_custom_call.1} parent=39 // pred_fallthru
            _
          %502 = vnop
        $region40: #{tpu_custom_call.1} parent=35 // pred_fallthru
          _
      $region36: #{tpu_custom_call.1} parent=5 // pred_fallthru
        _
      %p503 = scmp.le.s32.totalorder 2, %s11
      // Predicated region
      $region89: #{tpu_custom_call.1} parent=5 // pred_check
        %p504 = pneg %p503
      $region90: #{tpu_custom_call.1} parent=5 // pred_check_branch
        %506 = sbr.rel (%p504) target = $region92
      $region91: #{tpu_custom_call.1} parent=5 // pred_region
        %s507 = ssub.s32 %s11, 2
        // Predicated region
        $region93: #{tpu_custom_call.1} parent=91 // pred_check
          %p508 = pneg %p134
        $region94: #{tpu_custom_call.1} parent=91 // pred_check_branch
          %510 = sbr.rel (%p508) target = $region96
        $region95: #{tpu_custom_call.1} parent=91 // pred_region
          %s511 = sand.u32 %s119, 1
          %s512 = sand.u32 %s119, 1
          %s513 = smul.addr %s512, 24
          %s514 = scalar_lea.vmem [#allocation3], %s513
        $region96: #{tpu_custom_call.1} parent=91 // pred_fallthru
          _
      $region92: #{tpu_custom_call.1} parent=5 // pred_fallthru
        _
    $region6: #{tpu_custom_call.1} parent=1 // loop_footer
      %s15 = sadd.s32 1, %s11
    $region7: #{tpu_custom_call.1} parent=1 // loop_footer_branch
      %10 = sbr.rel target = $region3
    $region8: #{tpu_custom_call.1} parent=1 // loop_exit
      _

</llo_original>
